<compile_context>
chip_gen: v5e
topology: v5e:2x2
jax: 0.10.0
libtpu: 0.0.40
codegen_flags: <defaults>
</compile_context>

<pallas_src>
import functools

import jax
import jax.numpy as jnp
from jax import lax
from jax.experimental import pallas as pl
from jax.experimental.pallas import tpu as pltpu

LANES = 128


def _soft_iou_sums_kernel(pred_ref, target_ref, acc_ref, *,
                          tile_rows, chunk_rows, rows, n_full_tiles):
    c = pl.program_id(0)              # core-split (parallel) axis
    i = pl.program_id(1)              # reduction (arbitrary) axis
    n_inner = pl.num_programs(1)
    tile_idx = c * n_inner + i        # logical (unclamped) tile index

    @pl.when(i == 0)
    def _():
        acc_ref[...] = jnp.zeros_like(acc_ref)

    n_chunks = tile_rows // chunk_rows        # static Python ints
    g = chunk_rows // 8

    def tile_sums(masked):
        def body(s, carry):
            ia, pa, ta = carry
            start = pl.multiple_of(s * chunk_rows, chunk_rows)
            p = pred_ref[pl.ds(start, chunk_rows), :].astype(jnp.float32)
            t = target_ref[pl.ds(start, chunk_rows), :].astype(jnp.float32)
            # sigmoid(x) = 0.5*tanh(0.5*x) + 0.5 : tanh -> EUP, no f32 divide.
            sp = 0.5 * jnp.tanh(0.5 * p) + 0.5
            if masked:
                # Last (ragged) data tile or a duplicated clamped tile: mask
                # by global row index before accumulating.
                row_ids = lax.broadcasted_iota(
                    jnp.int32, (chunk_rows, LANES), 0)
                grow = tile_idx * tile_rows + start + row_ids
                valid = grow < rows
                sp = jnp.where(valid, sp, 0.0)
                t = jnp.where(valid, t, 0.0)
            inter = sp * t
            ia = ia + jnp.sum(inter.reshape(g, 8, LANES), axis=0)
            pa = pa + jnp.sum(sp.reshape(g, 8, LANES), axis=0)
            ta = ta + jnp.sum(t.reshape(g, 8, LANES), axis=0)
            return ia, pa, ta

        z = jnp.zeros((8, LANES), jnp.float32)
        ia, pa, ta = lax.fori_loop(0, n_chunks, body, (z, z, z),
                                   unroll=min(2, n_chunks))
        acc_ref[0, 0] += ia
        acc_ref[0, 1] += pa
        acc_ref[0, 2] += ta

    # Interior, fully-valid tiles: unmasked fast path.
    @pl.when(tile_idx < n_full_tiles)
    def _():
        tile_sums(masked=False)

    # Partial last tile and any duplicated (clamped) tiles: masked path.
    @pl.when(tile_idx >= n_full_tiles)
    def _():
        tile_sums(masked=True)


def _default_core_splits():
    try:
        kind = jax.devices()[0].device_kind.lower()
    except Exception:
        return 1
    # v7x has 2 TensorCores per chip; v5e/v6e have 1.
    if "v7" in kind or "7x" in kind:
        return 2
    return 1


def soft_iou_loss(pred, target, *, tile_rows=4096, core_splits=None):
    """Pallas implementation of SoftLoULoss1.forward (smooth = 0.0)."""
    assert pred.shape == target.shape
    total = pred.size
    assert total > 0

    flat_p = pred.reshape(-1)
    flat_t = target.reshape(-1)

    # 1024-aligned prefix goes through the kernel; the <=1023-element ragged
    # tail is reduced in plain JAX (avoids a full jnp.pad copy of both inputs
    # for a bandwidth-bound kernel).
    aligned = (total // (8 * LANES)) * (8 * LANES)
    if aligned < total:
        tp = flat_p[aligned:].astype(jnp.float32)
        tt = flat_t[aligned:].astype(jnp.float32)
        sp_tail = 0.5 * jnp.tanh(0.5 * tp) + 0.5
        tail = jnp.stack([jnp.sum(sp_tail * tt), jnp.sum(sp_tail),
                          jnp.sum(tt)])
    else:
        tail = jnp.zeros((3,), jnp.float32)

    if aligned == 0:
        inter, psum, tsum = tail[0], tail[1], tail[2]
    else:
        rows = aligned // LANES                       # multiple of 8
        pred2d = flat_p[:aligned].reshape(rows, LANES)
        target2d = flat_t[:aligned].reshape(rows, LANES)

        if rows >= 128:
            tile_rows = min(tile_rows, rows)
            tile_rows = max(128, (tile_rows // 128) * 128)
            chunk_rows = 128
        else:
            tile_rows = rows
            chunk_rows = rows

        n_data_tiles = pl.cdiv(rows, tile_rows)
        n_full_tiles = rows // tile_rows
        if core_splits is None:
            core_splits = _default_core_splits()
        n_split = core_splits if n_data_tiles >= core_splits else 1
        n_inner = pl.cdiv(n_data_tiles, n_split)

        def in_map(c, i):
            # Clamp so duplicated tiles (when n_split*n_inner > n_data_tiles)
            # never index past the array; the kernel fully masks them.
            return (jnp.minimum(c * n_inner + i, n_data_tiles - 1), 0)

        kernel = functools.partial(
            _soft_iou_sums_kernel,
            tile_rows=tile_rows, chunk_rows=chunk_rows,
            rows=rows, n_full_tiles=n_full_tiles)

        in_bytes = (pred2d.size * pred2d.dtype.itemsize
                    + target2d.size * target2d.dtype.itemsize)
        cost = pl.CostEstimate(flops=7 * aligned, transcendentals=aligned,
                               bytes_accessed=in_bytes
                               + n_split * 3 * 8 * LANES * 4)

        # Raise the scoped-VMEM limit only when the double-buffered input
        # blocks would not fit the smallest default (v5e: 16 MiB).
        block_bytes = tile_rows * LANES * (pred2d.dtype.itemsize
                                           + target2d.dtype.itemsize)
        need = 2 * block_bytes + (1 << 20)
        vmem_limit = int(need) if need > (16 << 20) else None

        def run(leading_sem):
            params = dict(dimension_semantics=(leading_sem, pltpu.ARBITRARY))
            if vmem_limit is not None:
                params["vmem_limit_bytes"] = vmem_limit
            return pl.pallas_call(
                kernel,
                out_shape=jax.ShapeDtypeStruct((n_split, 3, 8, LANES),
                                               jnp.float32),
                grid=(n_split, n_inner),
                in_specs=[
                    pl.BlockSpec((tile_rows, LANES), in_map),
                    pl.BlockSpec((tile_rows, LANES), in_map),
                ],
                out_specs=pl.BlockSpec((1, 3, 8, LANES),
                                       lambda c, i: (c, 0, 0, 0)),
                compiler_params=pltpu.CompilerParams(**params),
                cost_estimate=cost,
            )(pred2d, target2d)

        # On v7x really split the leading axis across the two TensorCores;
        # fall back to plain PARALLEL if CORE_PARALLEL does not lower on the
        # current chip/toolchain.
        semantics = ([pltpu.CORE_PARALLEL, pltpu.PARALLEL]
                     if n_split > 1 else [pltpu.PARALLEL])
        partials = None
        for idx, lead in enumerate(semantics):
            try:
                partials = run(lead)
                break
            except Exception:
                if idx == len(semantics) - 1:
                    raise

        sums = jnp.sum(partials, axis=(0, 2, 3)) + tail  # (3,)
        inter, psum, tsum = sums[0], sums[1], sums[2]

    smooth = 0.0
    iou = (inter + smooth) / (psum + tsum - inter + smooth)
    # torch.mean of a scalar is the scalar itself.
    return 1.0 - iou


def _reference(pred, target):
    p = jax.nn.sigmoid(pred.astype(jnp.float32))
    t = target.astype(jnp.float32)
    inter = jnp.sum(p * t)
    return 1.0 - inter / (jnp.sum(p) + jnp.sum(t) - inter)


if __name__ == "__main__":
    key = jax.random.PRNGKey(0)
    k1, k2 = jax.random.split(key)

    # NCHW, small shapes: batch=2, channels=4, spatial=16x16
    pred = jax.random.normal(k1, (2, 4, 16, 16), dtype=jnp.float32)
    target = (jax.random.uniform(k2, (2, 4, 16, 16)) > 0.5).astype(jnp.float32)

    loss = soft_iou_loss(pred, target)
    loss = jax.block_until_ready(loss)
    ref = _reference(pred, target)
    assert jnp.allclose(loss, ref, rtol=1e-5, atol=1e-5), (loss, ref)

    # Extra sanity check: a lane-unaligned shape exercises the JAX tail path
    # plus the in-kernel masking of the aligned prefix.
    k3, k4 = jax.random.split(k1)
    pred_r = jax.random.normal(k3, (2, 3, 13, 17), dtype=jnp.float32)
    target_r = (jax.random.uniform(k4, (2, 3, 13, 17)) > 0.5).astype(jnp.float32)
    loss_r = jax.block_until_ready(soft_iou_loss(pred_r, target_r))
    ref_r = _reference(pred_r, target_r)
    assert jnp.allclose(loss_r, ref_r, rtol=1e-5, atol=1e-5), (loss_r, ref_r)

    print("KERNEL_OK")
</pallas_src>

<mosaic_0001>
module attributes {stable_mosaic.version = 11 : i64} {
  func.func @_soft_iou_sums_kernel(%arg0: i32, %arg1: i32, %arg2: memref<16x128xf32, #tpu.memory_space<vmem>>, %arg3: memref<16x128xf32, #tpu.memory_space<vmem>>, %arg4: memref<1x3x8x128xf32, #tpu.memory_space<vmem>>) attributes {dimension_semantics = [#tpu.dimension_semantics<parallel>, #tpu.dimension_semantics<arbitrary>], iteration_bounds = array<i64: 1, 1>, scalar_prefetch = 0 : i64, scratch_operands = 0 : i64, tpu.core_type = #tpu.core_type<tc>, window_params = [{transform_indices = @transform_0, window_bounds = array<i64: 16, 128>}, {transform_indices = @transform_1, window_bounds = array<i64: 16, 128>}, {transform_indices = @transform_2, window_bounds = array<i64: 1, 3, 8, 128>}]} {
    %c1_i32 = arith.constant 1 : i32
    %0 = arith.muli %arg0, %c1_i32 : i32
    %1 = arith.addi %0, %arg1 : i32
    %c0_i32 = arith.constant 0 : i32
    %2 = arith.cmpi eq, %arg1, %c0_i32 : i32
    %3 = arith.extui %2 : i1 to i32
    %c0_i32_0 = arith.constant 0 : i32
    %4 = arith.cmpi ne, %3, %c0_i32_0 : i32
    scf.if %4 {
      %cst = arith.constant 0.000000e+00 : f32
      %11 = vector.broadcast %cst : f32 to vector<1x3x8x128xf32>
      %c0 = arith.constant 0 : index
      %c0_5 = arith.constant 0 : index
      %c0_6 = arith.constant 0 : index
      %c0_7 = arith.constant 0 : index
      %12 = vector.load %arg4[%c0, %c0_5, %c0_6, %c0_7] : memref<1x3x8x128xf32, #tpu.memory_space<vmem>>, vector<1x3x8x128xf32>
      tpu.vector_store %arg4[%c0, %c0_5, %c0_6, %c0_7], %11 {strides = array<i32>} : memref<1x3x8x128xf32, #tpu.memory_space<vmem>>, vector<1x3x8x128xf32>,
    } else {
    }
    %c1_i32_1 = arith.constant 1 : i32
    %5 = arith.cmpi slt, %1, %c1_i32_1 : i32
    %6 = arith.extui %5 : i1 to i32
    %c0_i32_2 = arith.constant 0 : i32
    %7 = arith.cmpi ne, %6, %c0_i32_2 : i32
    scf.if %7 {
      %cst = arith.constant 0.000000e+00 : f32
      %11 = vector.broadcast %cst : f32 to vector<8x128xf32>
      %c0_i32_5 = arith.constant 0 : i32
      %c16_i32 = arith.constant 16 : i32
      %12 = arith.muli %c0_i32_5, %c16_i32 : i32
      %13 = tpu.assume_multiple %12, 16 : i32
      %14 = arith.index_cast %13 : i32 to index
      %c0 = arith.constant 0 : index
      %15 = vector.load %arg2[%14, %c0] : memref<16x128xf32, #tpu.memory_space<vmem>>, vector<16x128xf32>
      %16 = arith.index_cast %13 : i32 to index
      %c0_6 = arith.constant 0 : index
      %17 = vector.load %arg3[%16, %c0_6] : memref<16x128xf32, #tpu.memory_space<vmem>>, vector<16x128xf32>
      %cst_7 = arith.constant 5.000000e-01 : f32
      %18 = vector.broadcast %cst_7 : f32 to vector<16x128xf32>
      %19 = arith.mulf %18, %15 : vector<16x128xf32>
      %20 = math.tanh %19 : vector<16x128xf32>
      %cst_8 = arith.constant 5.000000e-01 : f32
      %21 = vector.broadcast %cst_8 : f32 to vector<16x128xf32>
      %22 = arith.mulf %21, %20 : vector<16x128xf32>
      %cst_9 = arith.constant 5.000000e-01 : f32
      %23 = vector.broadcast %cst_9 : f32 to vector<16x128xf32>
      %24 = arith.addf %22, %23 : vector<16x128xf32>
      %25 = arith.mulf %24, %17 : vector<16x128xf32>
      %26 = vector.shape_cast %25 : vector<16x128xf32> to vector<2x8x128xf32>
      %cst_10 = arith.constant dense<0.000000e+00> : vector<8x128xf32>
      %27 = vector.multi_reduction <add>, %26, %cst_10 [0] : vector<2x8x128xf32> to vector<8x128xf32>
      %28 = arith.addf %11, %27 : vector<8x128xf32>
      %29 = vector.shape_cast %24 : vector<16x128xf32> to vector<2x8x128xf32>
      %cst_11 = arith.constant dense<0.000000e+00> : vector<8x128xf32>
      %30 = vector.multi_reduction <add>, %29, %cst_11 [0] : vector<2x8x128xf32> to vector<8x128xf32>
      %31 = arith.addf %11, %30 : vector<8x128xf32>
      %32 = vector.shape_cast %17 : vector<16x128xf32> to vector<2x8x128xf32>
      %cst_12 = arith.constant dense<0.000000e+00> : vector<8x128xf32>
      %33 = vector.multi_reduction <add>, %32, %cst_12 [0] : vector<2x8x128xf32> to vector<8x128xf32>
      %34 = arith.addf %11, %33 : vector<8x128xf32>
      %c1_i32_13 = arith.constant 1 : i32
      %c0_14 = arith.constant 0 : index
      %c0_15 = arith.constant 0 : index
      %c0_16 = arith.constant 0 : index
      %c0_17 = arith.constant 0 : index
      %35 = vector.load %arg4[%c0_14, %c0_15, %c0_16, %c0_17] : memref<1x3x8x128xf32, #tpu.memory_space<vmem>>, vector<1x1x8x128xf32>
      %36 = vector.shape_cast %35 : vector<1x1x8x128xf32> to vector<8x128xf32>
      %37 = arith.addf %36, %28 : vector<8x128xf32>
      %c0_18 = arith.constant 0 : index
      %c0_19 = arith.constant 0 : index
      %c0_20 = arith.constant 0 : index
      %c0_21 = arith.constant 0 : index
      %38 = vector.load %arg4[%c0_18, %c0_19, %c0_20, %c0_21] : memref<1x3x8x128xf32, #tpu.memory_space<vmem>>, vector<1x1x8x128xf32>
      %39 = vector.shape_cast %38 : vector<1x1x8x128xf32> to vector<8x128xf32>
      %40 = vector.shape_cast %37 : vector<8x128xf32> to vector<1x1x8x128xf32>
      tpu.vector_store %arg4[%c0_18, %c0_19, %c0_20, %c0_21], %40 {strides = array<i32>} : memref<1x3x8x128xf32, #tpu.memory_space<vmem>>, vector<1x1x8x128xf32>,
      %c0_22 = arith.constant 0 : index
      %c1 = arith.constant 1 : index
      %c0_23 = arith.constant 0 : index
      %c0_24 = arith.constant 0 : index
      %41 = vector.load %arg4[%c0_22, %c1, %c0_23, %c0_24] : memref<1x3x8x128xf32, #tpu.memory_space<vmem>>, vector<1x1x8x128xf32>
      %42 = vector.shape_cast %41 : vector<1x1x8x128xf32> to vector<8x128xf32>
      %43 = arith.addf %42, %31 : vector<8x128xf32>
      %c0_25 = arith.constant 0 : index
      %c1_26 = arith.constant 1 : index
      %c0_27 = arith.constant 0 : index
      %c0_28 = arith.constant 0 : index
      %44 = vector.load %arg4[%c0_25, %c1_26, %c0_27, %c0_28] : memref<1x3x8x128xf32, #tpu.memory_space<vmem>>, vector<1x1x8x128xf32>
      %45 = vector.shape_cast %44 : vector<1x1x8x128xf32> to vector<8x128xf32>
      %46 = vector.shape_cast %43 : vector<8x128xf32> to vector<1x1x8x128xf32>
      tpu.vector_store %arg4[%c0_25, %c1_26, %c0_27, %c0_28], %46 {strides = array<i32>} : memref<1x3x8x128xf32, #tpu.memory_space<vmem>>, vector<1x1x8x128xf32>,
      %c0_29 = arith.constant 0 : index
      %c2 = arith.constant 2 : index
      %c0_30 = arith.constant 0 : index
      %c0_31 = arith.constant 0 : index
      %47 = vector.load %arg4[%c0_29, %c2, %c0_30, %c0_31] : memref<1x3x8x128xf32, #tpu.memory_space<vmem>>, vector<1x1x8x128xf32>
      %48 = vector.shape_cast %47 : vector<1x1x8x128xf32> to vector<8x128xf32>
      %49 = arith.addf %48, %34 : vector<8x128xf32>
      %c0_32 = arith.constant 0 : index
      %c2_33 = arith.constant 2 : index
      %c0_34 = arith.constant 0 : index
      %c0_35 = arith.constant 0 : index
      %50 = vector.load %arg4[%c0_32, %c2_33, %c0_34, %c0_35] : memref<1x3x8x128xf32, #tpu.memory_space<vmem>>, vector<1x1x8x128xf32>
      %51 = vector.shape_cast %50 : vector<1x1x8x128xf32> to vector<8x128xf32>
      %52 = vector.shape_cast %49 : vector<8x128xf32> to vector<1x1x8x128xf32>
      tpu.vector_store %arg4[%c0_32, %c2_33, %c0_34, %c0_35], %52 {strides = array<i32>} : memref<1x3x8x128xf32, #tpu.memory_space<vmem>>, vector<1x1x8x128xf32>,
    } else {
    }
    %c1_i32_3 = arith.constant 1 : i32
    %8 = arith.cmpi sge, %1, %c1_i32_3 : i32
    %9 = arith.extui %8 : i1 to i32
    %c0_i32_4 = arith.constant 0 : i32
    %10 = arith.cmpi ne, %9, %c0_i32_4 : i32
    scf.if %10 {
      %cst = arith.constant 0.000000e+00 : f32
      %11 = vector.broadcast %cst : f32 to vector<8x128xf32>
      %c0_i32_5 = arith.constant 0 : i32
      %c16_i32 = arith.constant 16 : i32
      %12 = arith.muli %c0_i32_5, %c16_i32 : i32
      %13 = tpu.assume_multiple %12, 16 : i32
      %14 = arith.index_cast %13 : i32 to index
      %c0 = arith.constant 0 : index
      %15 = vector.load %arg2[%14, %c0] : memref<16x128xf32, #tpu.memory_space<vmem>>, vector<16x128xf32>
      %16 = arith.index_cast %13 : i32 to index
      %c0_6 = arith.constant 0 : index
      %17 = vector.load %arg3[%16, %c0_6] : memref<16x128xf32, #tpu.memory_space<vmem>>, vector<16x128xf32>
      %cst_7 = arith.constant 5.000000e-01 : f32
      %18 = vector.broadcast %cst_7 : f32 to vector<16x128xf32>
      %19 = arith.mulf %18, %15 : vector<16x128xf32>
      %20 = math.tanh %19 : vector<16x128xf32>
      %cst_8 = arith.constant 5.000000e-01 : f32
      %21 = vector.broadcast %cst_8 : f32 to vector<16x128xf32>
      %22 = arith.mulf %21, %20 : vector<16x128xf32>
      %cst_9 = arith.constant 5.000000e-01 : f32
      %23 = vector.broadcast %cst_9 : f32 to vector<16x128xf32>
      %24 = arith.addf %22, %23 : vector<16x128xf32>
      %25 = tpu.iota {dimensions = array<i32: 0>} : vector<16x128xi32>
      %c16_i32_10 = arith.constant 16 : i32
      %26 = arith.muli %1, %c16_i32_10 : i32
      %27 = arith.addi %26, %13 : i32
      %28 = vector.broadcast %27 : i32 to vector<16x128xi32>
      %29 = arith.addi %28, %25 : vector<16x128xi32>
      %c16_i32_11 = arith.constant 16 : i32
      %30 = vector.broadcast %c16_i32_11 : i32 to vector<16x128xi32>
      %31 = arith.cmpi slt, %29, %30 : vector<16x128xi32>
      %cst_12 = arith.constant 0.000000e+00 : f32
      %32 = vector.broadcast %cst_12 : f32 to vector<16x128xf32>
      %33 = arith.select %31, %24, %32 : vector<16x128xi1>, vector<16x128xf32>
      %cst_13 = arith.constant 0.000000e+00 : f32
      %34 = vector.broadcast %cst_13 : f32 to vector<16x128xf32>
      %35 = arith.select %31, %17, %34 : vector<16x128xi1>, vector<16x128xf32>
      %36 = arith.mulf %33, %35 : vector<16x128xf32>
      %37 = vector.shape_cast %36 : vector<16x128xf32> to vector<2x8x128xf32>
      %cst_14 = arith.constant dense<0.000000e+00> : vector<8x128xf32>
      %38 = vector.multi_reduction <add>, %37, %cst_14 [0] : vector<2x8x128xf32> to vector<8x128xf32>
      %39 = arith.addf %11, %38 : vector<8x128xf32>
      %40 = vector.shape_cast %33 : vector<16x128xf32> to vector<2x8x128xf32>
      %cst_15 = arith.constant dense<0.000000e+00> : vector<8x128xf32>
      %41 = vector.multi_reduction <add>, %40, %cst_15 [0] : vector<2x8x128xf32> to vector<8x128xf32>
      %42 = arith.addf %11, %41 : vector<8x128xf32>
      %43 = vector.shape_cast %35 : vector<16x128xf32> to vector<2x8x128xf32>
      %cst_16 = arith.constant dense<0.000000e+00> : vector<8x128xf32>
      %44 = vector.multi_reduction <add>, %43, %cst_16 [0] : vector<2x8x128xf32> to vector<8x128xf32>
      %45 = arith.addf %11, %44 : vector<8x128xf32>
      %c1_i32_17 = arith.constant 1 : i32
      %c0_18 = arith.constant 0 : index
      %c0_19 = arith.constant 0 : index
      %c0_20 = arith.constant 0 : index
      %c0_21 = arith.constant 0 : index
      %46 = vector.load %arg4[%c0_18, %c0_19, %c0_20, %c0_21] : memref<1x3x8x128xf32, #tpu.memory_space<vmem>>, vector<1x1x8x128xf32>
      %47 = vector.shape_cast %46 : vector<1x1x8x128xf32> to vector<8x128xf32>
      %48 = arith.addf %47, %39 : vector<8x128xf32>
      %c0_22 = arith.constant 0 : index
      %c0_23 = arith.constant 0 : index
      %c0_24 = arith.constant 0 : index
      %c0_25 = arith.constant 0 : index
      %49 = vector.load %arg4[%c0_22, %c0_23, %c0_24, %c0_25] : memref<1x3x8x128xf32, #tpu.memory_space<vmem>>, vector<1x1x8x128xf32>
      %50 = vector.shape_cast %49 : vector<1x1x8x128xf32> to vector<8x128xf32>
      %51 = vector.shape_cast %48 : vector<8x128xf32> to vector<1x1x8x128xf32>
      tpu.vector_store %arg4[%c0_22, %c0_23, %c0_24, %c0_25], %51 {strides = array<i32>} : memref<1x3x8x128xf32, #tpu.memory_space<vmem>>, vector<1x1x8x128xf32>,
      %c0_26 = arith.constant 0 : index
      %c1 = arith.constant 1 : index
      %c0_27 = arith.constant 0 : index
      %c0_28 = arith.constant 0 : index
      %52 = vector.load %arg4[%c0_26, %c1, %c0_27, %c0_28] : memref<1x3x8x128xf32, #tpu.memory_space<vmem>>, vector<1x1x8x128xf32>
      %53 = vector.shape_cast %52 : vector<1x1x8x128xf32> to vector<8x128xf32>
      %54 = arith.addf %53, %42 : vector<8x128xf32>
      %c0_29 = arith.constant 0 : index
      %c1_30 = arith.constant 1 : index
      %c0_31 = arith.constant 0 : index
      %c0_32 = arith.constant 0 : index
      %55 = vector.load %arg4[%c0_29, %c1_30, %c0_31, %c0_32] : memref<1x3x8x128xf32, #tpu.memory_space<vmem>>, vector<1x1x8x128xf32>
      %56 = vector.shape_cast %55 : vector<1x1x8x128xf32> to vector<8x128xf32>
      %57 = vector.shape_cast %54 : vector<8x128xf32> to vector<1x1x8x128xf32>
      tpu.vector_store %arg4[%c0_29, %c1_30, %c0_31, %c0_32], %57 {strides = array<i32>} : memref<1x3x8x128xf32, #tpu.memory_space<vmem>>, vector<1x1x8x128xf32>,
      %c0_33 = arith.constant 0 : index
      %c2 = arith.constant 2 : index
      %c0_34 = arith.constant 0 : index
      %c0_35 = arith.constant 0 : index
      %58 = vector.load %arg4[%c0_33, %c2, %c0_34, %c0_35] : memref<1x3x8x128xf32, #tpu.memory_space<vmem>>, vector<1x1x8x128xf32>
      %59 = vector.shape_cast %58 : vector<1x1x8x128xf32> to vector<8x128xf32>
      %60 = arith.addf %59, %45 : vector<8x128xf32>
      %c0_36 = arith.constant 0 : index
      %c2_37 = arith.constant 2 : index
      %c0_38 = arith.constant 0 : index
      %c0_39 = arith.constant 0 : index
      %61 = vector.load %arg4[%c0_36, %c2_37, %c0_38, %c0_39] : memref<1x3x8x128xf32, #tpu.memory_space<vmem>>, vector<1x1x8x128xf32>
      %62 = vector.shape_cast %61 : vector<1x1x8x128xf32> to vector<8x128xf32>
      %63 = vector.shape_cast %60 : vector<8x128xf32> to vector<1x1x8x128xf32>
      tpu.vector_store %arg4[%c0_36, %c2_37, %c0_38, %c0_39], %63 {strides = array<i32>} : memref<1x3x8x128xf32, #tpu.memory_space<vmem>>, vector<1x1x8x128xf32>,
    } else {
    }
    return
  }
  func.func @transform_0(%arg0: i32, %arg1: i32) -> (i32, i32) {
    %c1_i32 = arith.constant 1 : i32
    %0 = arith.muli %arg0, %c1_i32 : i32
    %1 = arith.addi %0, %arg1 : i32
    %c0_i32 = arith.constant 0 : i32
    %2 = arith.minsi %1, %c0_i32 : i32
    %c0_i32_0 = arith.constant 0 : i32
    %c0_i32_1 = arith.constant 0 : i32
    return %2, %c0_i32_0 : i32, i32
  }
  func.func @transform_1(%arg0: i32, %arg1: i32) -> (i32, i32) {
    %c1_i32 = arith.constant 1 : i32
    %0 = arith.muli %arg0, %c1_i32 : i32
    %1 = arith.addi %0, %arg1 : i32
    %c0_i32 = arith.constant 0 : i32
    %2 = arith.minsi %1, %c0_i32 : i32
    %c0_i32_0 = arith.constant 0 : i32
    %c0_i32_1 = arith.constant 0 : i32
    return %2, %c0_i32_0 : i32, i32
  }
  func.func @transform_2(%arg0: i32, %arg1: i32) -> (i32, i32, i32, i32) {
    %c0_i32 = arith.constant 0 : i32
    %c0_i32_0 = arith.constant 0 : i32
    %c0_i32_1 = arith.constant 0 : i32
    %c0_i32_2 = arith.constant 0 : i32
    return %arg0, %c0_i32, %c0_i32_0, %c0_i32_1 : i32, i32, i32, i32
  }
}

</mosaic_0001>

<llo_original>
// kernel: tpu_custom_call.1
$region0: #{tpu_custom_call.1}
  #allocation0 [shape = 'u32[]', space=smem, size = 0x4, offset = 0x4, fixed_abs, tag = 'smem constant byte address 0x4 - core index']
  #allocation1 [shape = 'u32[72,128]{1,0:T(1,128)}', space=vmem, size = 0x9000, scoped, tag = 'internal scratch']
  %s0 = inlined_call_operand.hbm [shape: f32[16,128], index: 0, kind: input, shape index: {}]
  %s1 = inlined_call_operand.hbm [shape: f32[16,128], index: 1, kind: input, shape index: {}]
  %s2 = inlined_call_operand.hbm [shape: f32[1,3,8,128], index: 2, kind: output, shape index: {}]
  %s3 = sld [smem:[#allocation0]]
  $region38: #{tpu_custom_call.1} parent=0
    _
  %s5 = ssub.s32 1, %s3
  %s6 = scalar_select 0, %s5, %s3
  $region1: #{tpu_custom_call.1} parent=0
    #allocation2 [shape = 'u8[8192]{0}', space=vmem, size = 0x2000, scoped, tag = 'input window, operand 0, single buffered']
    #allocation3 [shape = 's32[1]{0}', space=sflag, size = 0x4, scoped, tag = 'scoped memory for tpu_custom_call.1']
    #allocation4 [shape = 's32[1]{0}', space=sflag, size = 0x4, scoped, tag = 'scoped memory for tpu_custom_call.1']
    #allocation5 [shape = 'u8[8192]{0}', space=vmem, size = 0x2000, scoped, tag = 'input window, operand 1, single buffered']
    #allocation6 [shape = 's32[1]{0}', space=sflag, size = 0x4, scoped, tag = 'scoped memory for tpu_custom_call.1']
    #allocation7 [shape = 'u8[12288]{0}', space=vmem, size = 0x3000, scoped, tag = 'output window, operand 0, single buffered']
    %7 = vsyncpa [#allocation3], 0
    %8 = vsyncpa [#allocation6], 0
    %9 = vsyncpa [#allocation4], 0
    // Predicated region
    $region2: #{tpu_custom_call.1} parent=1 // pred_check
      _
    $region3: #{tpu_custom_call.1} parent=1 // pred_check_branch
      %11 = sbr.rel (0) target = $region5
    $region4: #{tpu_custom_call.1} parent=1 // pred_region
      %s12 = sadd.s32 0, 0
      %p13 = scmp.lt.s32.totalorder %s12, 0
      %s14 = scalar_select %p13, %s12, 0
      %s15 = smul.u32 2, %s14
      %17 = vsyncadd [#allocation3], 0
      %s18 = smul.addr %s15, 8
      %s19 = scalar_lea.hbm %s0, %s18
      %s20 = sshll.u32 %s19, 4
      %s21 = int_to_ptr.hbm [resolvable:$true] %s20
      %s22 = sshll.u32 [#allocation2], 4
      %s23 = int_to_ptr.vmem [resolvable:$true] %s22
      %28 = dma.hbm_to_vmem [thread:$0]  %s21, 256, %s23, [#allocation3], 128, 128, 8
    $region5: #{tpu_custom_call.1} parent=1 // pred_fallthru
      _
    // Predicated region
    $region6: #{tpu_custom_call.1} parent=1 // pred_check
      _
    $region7: #{tpu_custom_call.1} parent=1 // pred_check_branch
      %30 = sbr.rel (0) target = $region9
    $region8: #{tpu_custom_call.1} parent=1 // pred_region
      %s31 = sadd.s32 0, 0
      %p32 = scmp.lt.s32.totalorder %s31, 0
      %s33 = scalar_select %p32, %s31, 0
      %s34 = smul.u32 2, %s33
      %36 = vsyncadd [#allocation6], 0
      %s37 = smul.addr %s34, 8
      %s38 = scalar_lea.hbm %s1, %s37
      %s39 = sshll.u32 %s38, 4
      %s40 = int_to_ptr.hbm [resolvable:$true] %s39
      %s41 = sshll.u32 [#allocation5], 4
      %s42 = int_to_ptr.vmem [resolvable:$true] %s41
      %47 = dma.hbm_to_vmem [thread:$0]  %s40, 256, %s42, [#allocation6], 128, 128, 8
    $region9: #{tpu_custom_call.1} parent=1 // pred_fallthru
      _
    // Predicated region
    $region10: #{tpu_custom_call.1} parent=1 // pred_check
      _
    $region11: #{tpu_custom_call.1} parent=1 // pred_check_branch
      %49 = sbr.rel (0) target = $region13
    $region12: #{tpu_custom_call.1} parent=1 // pred_region
      %51 = dma.done [#allocation3], 256
    $region13: #{tpu_custom_call.1} parent=1 // pred_fallthru
      _
    // Predicated region
    $region14: #{tpu_custom_call.1} parent=1 // pred_check
      _
    $region15: #{tpu_custom_call.1} parent=1 // pred_check_branch
      %53 = sbr.rel (0) target = $region17
    $region16: #{tpu_custom_call.1} parent=1 // pred_region
      %55 = dma.done [#allocation6], 256
    $region17: #{tpu_custom_call.1} parent=1 // pred_fallthru
      _
    %s56 = sadd.s32 0, 0
    %p57 = scmp.lt.s32.totalorder %s56, 0
    %s58 = scalar_select %p57, %s56, 0
    %s59 = smul.u32 2, %s58
    %s60 = sadd.s32 0, 0
    %p61 = scmp.lt.s32.totalorder %s60, 0
    %s62 = scalar_select %p61, %s60, 0
    %s63 = smul.u32 2, %s62
    %s64 = sadd.s32 0, 0
    %p65 = scmp.eq.s32.totalorder 0, 0
    // Predicated region
    $region18: #{tpu_custom_call.1} parent=1 // pred_check
      %p66 = pneg %p65
    $region19: #{tpu_custom_call.1} parent=1 // pred_check_branch
      %68 = sbr.rel (%p66) target = $region21
    $region20: #{tpu_custom_call.1} parent=1 // pred_region
      %69 = vst [vmem:[#allocation7] sm:$0xff] 0.0
      %70 = vst [vmem:[#allocation7 + $0x8] sm:$0xff] 0.0
      %71 = vst [vmem:[#allocation7 + $0x10] sm:$0xff] 0.0
    $region21: #{tpu_custom_call.1} parent=1 // pred_fallthru
      _
    %p72 = scmp.lt.s32.totalorder %s64, 1
    // Predicated region
    $region22: #{tpu_custom_call.1} parent=1 // pred_check
      %p73 = pneg %p72
    $region23: #{tpu_custom_call.1} parent=1 // pred_check_branch
      %75 = sbr.rel (%p73) target = $region25
    $region24: #{tpu_custom_call.1} parent=1 // pred_region
      %v76 = vld [vmem:[#allocation2] sm:$0xff]
      %v77 = vld [vmem:[#allocation2 + $0x8] sm:$0xff]
      %v78 = vld [vmem:[#allocation5] sm:$0xff]
      %v79 = vld [vmem:[#allocation5 + $0x8] sm:$0xff]
      %v80 = vmul.f32 %v76, 0.5
      %v81 = vmul.f32 %v77, 0.5
      %v82 = vtanh.pop %v80
      %v83 = vtanh.pop %v81
      %v84 = vmul.f32 %v82, 0.5
      %v85 = vmul.f32 %v83, 0.5
      %v86 = vadd.f32 %v84, 0.5
      %v87 = vadd.f32 %v85, 0.5
      %v88 = vmul.f32 %v86, %v78
      %v89 = vmul.f32 %v87, %v79
      %v90 = vadd.f32 %v88, %v89
      %v91 = vadd.f32 %v90, 0.0
      %v92 = vadd.f32 %v86, %v87
      %v93 = vadd.f32 %v92, 0.0
      %v94 = vadd.f32 %v78, %v79
      %v95 = vadd.f32 %v94, 0.0
      %v96 = vld [vmem:[#allocation7] sm:$0xff]
      %v97 = vadd.f32 %v96, %v91
      %98 = vst [vmem:[#allocation7] sm:$0xff] %v97
      %s99 = scalar_lea.vmem [#allocation7], 8
      %v100 = vld [vmem:[%s99] sm:$0xff]
      %v101 = vadd.f32 %v100, %v93
      %102 = vst [vmem:[%s99] sm:$0xff] %v101
      %s103 = scalar_lea.vmem [#allocation7], 16
      %v104 = vld [vmem:[%s103] sm:$0xff]
      %v105 = vadd.f32 %v104, %v95
      %106 = vst [vmem:[%s103] sm:$0xff] %v105
    $region25: #{tpu_custom_call.1} parent=1 // pred_fallthru
      _
    %p107 = scmp.ge.s32.totalorder %s64, 1
    // Predicated region
    $region26: #{tpu_custom_call.1} parent=1 // pred_check
      %p108 = pneg %p107
    $region27: #{tpu_custom_call.1} parent=1 // pred_check_branch
      %110 = sbr.rel (%p108) target = $region29
    $region28: #{tpu_custom_call.1} parent=1 // pred_region
      %v111 = vld [vmem:[#allocation2] sm:$0xff]
      %v112 = vld [vmem:[#allocation2 + $0x8] sm:$0xff]
      %v113 = vld [vmem:[#allocation5] sm:$0xff]
      %v114 = vld [vmem:[#allocation5 + $0x8] sm:$0xff]
      %v115 = vmul.f32 %v111, 0.5
      %v116 = vmul.f32 %v112, 0.5
      %v117 = vtanh.pop %v115
      %v118 = vtanh.pop %v116
      %v119 = vmul.f32 %v117, 0.5
      %v120 = vmul.f32 %v118, 0.5
      %v121 = vadd.f32 %v119, 0.5
      %v122 = vadd.f32 %v120, 0.5
      %v123 = vlaneseq
      %v124 = vshrl.u32 %v123, 7
      %v125 = vadd.s32 %v124, 8
      %s126 = smul.u32 %s64, 16
      %s127 = sadd.s32 %s126, 0
      %v128 = vstv %s127
      %v129 = vadd.s32 %v128, %v124
      %v130 = vadd.s32 %v128, %v125
      %vm131 = vcmp.lt.s32.totalorder %v129, 16
      %vm132 = vcmp.lt.s32.totalorder %v130, 16
      %v133 = vsel %vm131, %v121, 0.0
      %v134 = vsel %vm132, %v122, 0.0
      %v135 = vsel %vm131, %v113, 0.0
      %v136 = vsel %vm132, %v114, 0.0
      %v137 = vmul.f32 %v133, %v135
      %v138 = vmul.f32 %v134, %v136
      %v139 = vadd.f32 %v137, %v138
      %v140 = vadd.f32 %v139, 0.0
      %v141 = vadd.f32 %v133, %v134
      %v142 = vadd.f32 %v141, 0.0
      %v143 = vadd.f32 %v135, %v136
      %v144 = vadd.f32 %v143, 0.0
      %v145 = vld [vmem:[#allocation7] sm:$0xff]
      %v146 = vadd.f32 %v145, %v140
      %147 = vst [vmem:[#allocation7] sm:$0xff] %v146
      %s148 = scalar_lea.vmem [#allocation7], 8
      %v149 = vld [vmem:[%s148] sm:$0xff]
      %v150 = vadd.f32 %v149, %v142
      %151 = vst [vmem:[%s148] sm:$0xff] %v150
      %s152 = scalar_lea.vmem [#allocation7], 16
      %v153 = vld [vmem:[%s152] sm:$0xff]
      %v154 = vadd.f32 %v153, %v144
      %155 = vst [vmem:[%s152] sm:$0xff] %v154
    $region29: #{tpu_custom_call.1} parent=1 // pred_fallthru
      _
    // Predicated region
    $region30: #{tpu_custom_call.1} parent=1 // pred_check
      _
    $region31: #{tpu_custom_call.1} parent=1 // pred_check_branch
      %157 = sbr.rel (0) target = $region33
    $region32: #{tpu_custom_call.1} parent=1 // pred_region
      %159 = vsyncadd [#allocation4], 0
      %s160 = sshll.u32 [#allocation7], 4
      %s161 = int_to_ptr.vmem [resolvable:$true] %s160
      %s162 = sshll.u32 %s2, 4
      %s163 = int_to_ptr.hbm [resolvable:$true] %s162
      %168 = dma.vmem_to_hbm [thread:$0]  %s161, 384, %s163, [#allocation4], 128, 128, 8
    $region33: #{tpu_custom_call.1} parent=1 // pred_fallthru
      _
    // Predicated region
    $region34: #{tpu_custom_call.1} parent=1 // pred_check
      _
    $region35: #{tpu_custom_call.1} parent=1 // pred_check_branch
      %170 = sbr.rel (0) target = $region37
    $region36: #{tpu_custom_call.1} parent=1 // pred_region
      %172 = dma.done [#allocation4], 384
    $region37: #{tpu_custom_call.1} parent=1 // pred_fallthru
      _
    %173 = vsyncpa [#allocation3], 1
    %174 = vsyncpa [#allocation6], 1
    %175 = vsyncpa [#allocation4], 1

</llo_original>
